<compile_context>
chip_gen: v5e
topology: v5e:2x2
jax: 0.10.0
libtpu: 0.0.40
codegen_flags: <defaults>
</compile_context>

<pallas_src>
import math

import jax
import jax.numpy as jnp
from jax.experimental import pallas as pl
from jax.experimental.pallas import tpu as pltpu

SQRT7 = math.sqrt(7.0)


def _round_up(x, m):
    return ((x + m - 1) // m) * m


def _device_kind():
    try:
        return jax.devices()[0].device_kind.lower()
    except Exception:
        return ""


def _default_operand_dtype():
    # v5e/v5p/v6e have a native int8 MXU path; v7x does not (fp8/bf16 only) and
    # v4 is safest in bf16.  bf16 integer operands + f32 accumulation are exact
    # for these ranges, so the fallback costs nothing in accuracy.
    kind = _device_kind()
    if ("v5" in kind) or ("v6" in kind):
        return jnp.int8
    return jnp.bfloat16


def _vmem_limit_bytes():
    kind = _device_kind()
    if ("v4" in kind) or ("v5" in kind) or ("v6" in kind):
        return 100 * 1024 * 1024          # 128 MiB physical VMEM parts
    return 52 * 1024 * 1024               # v7x-class: 64 MiB physical, keep headroom


# ----------------------------------------------------------------------------
# Pallas kernel: full BitNetMLP forward for one tile of rows.
# ----------------------------------------------------------------------------
def bitnet_mlp_kernel(scales_ref, x_ref, wgu_ref, wd_ref, o_ref):
    """scales_ref: SMEM f32[2] = [g_s^2 * u_s, d_s / 127]   (g_s = w_mean*scale, ...)
    x_ref:   VMEM f32[tm, H]
    wgu_ref: VMEM int8/bf16 [H, 2I]  ternary {-1,0,1}; [:, :I]=gate, [:, I:]=up
    wd_ref:  VMEM int8/bf16 [I, H]   ternary {-1,0,1}
    o_ref:   VMEM f32[tm, H]
    """
    two_i = wgu_ref.shape[1]
    inter_i = two_i // 2
    c_gu = scales_ref[0]
    c_d = scales_ref[1]

    op_dtype = wgu_ref.dtype
    acc_dtype = jnp.int32 if jnp.issubdtype(op_dtype, jnp.integer) else jnp.float32

    x = x_ref[...]                                               # [tm, H] f32

    # --- Int4Quantizer (absmean): x_q integer-valued in [-8, 7].  The divide
    #     is done once per row on [tm, 1], then broadcast-multiplied.
    beta = jnp.mean(jnp.abs(x), axis=-1, keepdims=True)          # [tm, 1]
    x_scale = SQRT7 / (beta + 1e-5)                              # [tm, 1]
    x_q = jnp.clip(jnp.round(x * x_scale), -8.0, 7.0)

    # --- gate_proj + up_proj fused into ONE MXU matmul on the concatenated
    #     weight.  Integer-valued operands -> exact dot products.
    gu = jnp.dot(x_q.astype(op_dtype), wgu_ref[...],
                 preferred_element_type=acc_dtype)               # [tm, 2I]
    g_raw = gu[:, :inter_i].astype(jnp.float32)
    u_raw = gu[:, inter_i:].astype(jnp.float32)

    # --- relu(gate)^2 gating on the RAW accumulators (scales folded out; they
    #     are non-negative so relu commutes):  inter = c_row * raw_inter,
    #     c_row = beta^3 * g_s^2 * u_s.
    g_raw = jnp.maximum(g_raw, 0.0)
    raw_inter = u_raw * (g_raw * g_raw)                          # [tm, I]

    # --- Int8Quantizer (absmax).  The quantization code only needs the per-row
    #     factor 127*c_row/(gamma+eps), computed on [tm, 1] and broadcast.
    raw_gamma = jnp.max(jnp.abs(raw_inter), axis=-1, keepdims=True)   # [tm, 1]
    c_row = (beta * beta * beta) * c_gu                          # [tm, 1]
    gamma = c_row * raw_gamma                                    # == rowmax|inter|
    q_scale = (127.0 * c_row) / (gamma + 1e-5)                   # [tm, 1]
    i_q = jnp.clip(jnp.round(raw_inter * q_scale), -128.0, 127.0)

    # --- down_proj on raw integer codes; full dequant (gamma * d_s / 127)
    #     applied once to the [tm, H] accumulator.
    out = jnp.dot(i_q.astype(op_dtype), wd_ref[...],
                  preferred_element_type=acc_dtype)              # [tm, H]
    o_ref[...] = (out.astype(jnp.float32) * (gamma * c_d)).astype(o_ref.dtype)


# ----------------------------------------------------------------------------
# Parameter setup (plain JAX glue)
# ----------------------------------------------------------------------------
def kaiming_uniform(key, out_features, in_features):
    # torch.nn.init.kaiming_uniform_(w, a=sqrt(5)) -> U(-1/sqrt(fan_in), 1/sqrt(fan_in))
    bound = 1.0 / math.sqrt(in_features)
    return jax.random.uniform(
        key, (out_features, in_features), dtype=jnp.float32, minval=-bound, maxval=bound
    )


def bitlinear_ternary(w):
    """BitLinear 1.58-bit quantization split into ternary values + scalar scale."""
    w_mean = jnp.mean(jnp.abs(w))
    w_q = jnp.clip(jnp.round(w / (w_mean + 1e-5)), -1.0, 1.0)   # {-1, 0, 1}
    return w_q, w_mean


# ----------------------------------------------------------------------------
# Wrapper
# ----------------------------------------------------------------------------
def bitnet_mlp(x, w_gate, w_up, w_down, s_gate, s_up, s_down, *, tm=256,
               operand_dtype=None, single_buffer_weights=True):
    """x: [batch, seq, hidden] float32. Returns [batch, seq, hidden] float32."""
    B, S, H = x.shape
    I = w_gate.shape[0]
    M = B * S

    if operand_dtype is None:
        operand_dtype = _default_operand_dtype()

    # Row tile: big enough to feed the MXU / amortize per-step overhead,
    # clamped (sublane-rounded) for small problems.
    tm_eff = min(tm, _round_up(M, 8))
    M_pad = _round_up(M, tm_eff)

    x2d = x.reshape(M, H).astype(jnp.float32)
    if M_pad != M:
        # Padded zero rows quantize to exact zeros (beta=0 -> x_q=0 -> out=0).
        x2d = jnp.pad(x2d, ((0, M_pad - M), (0, 0)))

    # Ternary weight values (narrow dtype, exact) transposed to [in, out].
    # gate and up are concatenated -> one MXU operand / one DMA stream.
    wg_q, wg_m = bitlinear_ternary(w_gate)     # [I, H]
    wu_q, wu_m = bitlinear_ternary(w_up)       # [I, H]
    wd_q, wd_m = bitlinear_ternary(w_down)     # [H, I]
    wgu_t = jnp.concatenate([wg_q.T, wu_q.T], axis=1)    # [H, 2I]
    wd_t = wd_q.T                                         # [I, H]

    g_s = wg_m * s_gate
    u_s = wu_m * s_up
    d_s = wd_m * s_down
    scales = jnp.stack([g_s * g_s * u_s, d_s / 127.0]).astype(jnp.float32)  # [2]

    grid = (M_pad // tm_eff,)
    flops = 6 * M_pad * H * I            # three matmuls, 2 flops per MAC
    w_bytes = (2 * H * I + I * H) * jnp.dtype(operand_dtype).itemsize
    bytes_accessed = 2 * M_pad * H * 4 + w_bytes + int(scales.size) * 4

    def run(op_dtype, single_buffer):
        w_kwargs = {}
        if single_buffer:
            # Grid-invariant weight blocks: one VMEM buffer is enough (the
            # constant index_map already suppresses re-fetch; Buffered(1)
            # drops the useless second buffer -> halves weight VMEM).
            w_kwargs["pipeline_mode"] = pl.Buffered(1)
        in_specs = [
            pl.BlockSpec(memory_space=pltpu.MemorySpace.SMEM),        # scales f32[2]
            pl.BlockSpec((tm_eff, H), lambda i: (i, 0)),              # x row tile
            pl.BlockSpec((H, 2 * I), lambda i: (0, 0), **w_kwargs),   # gate|up W (resident)
            pl.BlockSpec((I, H), lambda i: (0, 0), **w_kwargs),       # down W (resident)
        ]
        out = pl.pallas_call(
            bitnet_mlp_kernel,
            out_shape=jax.ShapeDtypeStruct((M_pad, H), jnp.float32),
            grid_spec=pltpu.PrefetchScalarGridSpec(
                num_scalar_prefetch=0,
                grid=grid,
                in_specs=in_specs,
                out_specs=pl.BlockSpec((tm_eff, H), lambda i: (i, 0)),
            ),
            compiler_params=pltpu.CompilerParams(
                dimension_semantics=("parallel",),     # row tiles shard across TCs
                vmem_limit_bytes=_vmem_limit_bytes(),
            ),
            cost_estimate=pl.CostEstimate(
                flops=flops, transcendentals=0, bytes_accessed=bytes_accessed
            ),
        )(scales, x2d, wgu_t.astype(op_dtype), wd_t.astype(op_dtype))
        return jax.block_until_ready(out)

    try:
        out2d = run(operand_dtype, single_buffer_weights)
    except Exception:
        # Portable fallback (previously validated config): exact bf16 integer
        # operands, default double-buffered weight blocks.
        out2d = run(jnp.bfloat16, False)

    if M_pad != M:
        out2d = out2d[:M]
    return out2d.reshape(B, S, H)


# ----------------------------------------------------------------------------
# Pure-JAX reference (faithful to the PyTorch module) for correctness check
# ----------------------------------------------------------------------------
def bitnet_mlp_ref(x, w_gate, w_up, w_down, s_gate, s_up, s_down):
    beta = jnp.mean(jnp.abs(x), axis=-1, keepdims=True)
    x_dq = jnp.clip(jnp.round(x * SQRT7 / (beta + 1e-5)), -8.0, 7.0) * beta

    def eff(w, s):
        w_mean = jnp.mean(jnp.abs(w))
        w_q = jnp.clip(jnp.round(w / (w_mean + 1e-5)), -1.0, 1.0)
        return w_q * w_mean * s

    wg = eff(w_gate, s_gate)
    wu = eff(w_up, s_up)
    wd = eff(w_down, s_down)

    gate = x_dq @ wg.T
    up = x_dq @ wu.T
    gate = jnp.maximum(gate, 0.0) ** 2
    inter = up * gate

    gamma = jnp.max(jnp.abs(inter), axis=-1, keepdims=True)
    i_dq = jnp.clip(jnp.round(inter * 127.0 / (gamma + 1e-5)), -128.0, 127.0) * gamma / 127.0
    return i_dq @ wd.T


if __name__ == "__main__":
    # Small config consistent with the module: hidden=32, intermediate=64.
    B, S, H, I = 2, 8, 32, 64

    key = jax.random.PRNGKey(0)
    kx, kg, ku, kd = jax.random.split(key, 4)

    x = jax.random.normal(kx, (B, S, H), dtype=jnp.float32)

    w_gate = kaiming_uniform(kg, I, H)   # gate_proj.weight  [I, H]
    w_up = kaiming_uniform(ku, I, H)     # up_proj.weight    [I, H]
    w_down = kaiming_uniform(kd, H, I)   # down_proj.weight  [H, I]
    s_gate = jnp.float32(1.0)            # BitLinear.scale (torch.ones(1))
    s_up = jnp.float32(1.0)
    s_down = jnp.float32(1.0)

    out = bitnet_mlp(x, w_gate, w_up, w_down, s_gate, s_up, s_down)
    out = jax.block_until_ready(out)

    ref = bitnet_mlp_ref(x, w_gate, w_up, w_down, s_gate, s_up, s_down)
    assert out.shape == (B, S, H)
    assert jnp.allclose(out, ref, atol=3e-3, rtol=3e-3), "mismatch vs reference"

    print("KERNEL_OK")
</pallas_src>

<mosaic_0001>
module attributes {stable_mosaic.version = 11 : i64} {
  func.func @bitnet_mlp_kernel(%arg0: i32, %arg1: memref<2xf32, #tpu.memory_space<smem>>, %arg2: memref<16x32xf32, #tpu.memory_space<vmem>>, %arg3: memref<32x128xbf16, #tpu.memory_space<vmem>>, %arg4: memref<64x32xbf16, #tpu.memory_space<vmem>>, %arg5: memref<16x32xf32, #tpu.memory_space<vmem>>) attributes {dimension_semantics = [#tpu.dimension_semantics<parallel>], iteration_bounds = array<i64: 1>, scalar_prefetch = 0 : i64, scratch_operands = 0 : i64, tpu.core_type = #tpu.core_type<tc>, window_params = [{transform_indices = @transform_0, window_bounds = array<i64: 2>}, {transform_indices = @transform_1, window_bounds = array<i64: 16, 32>}, {pipeline_mode = #tpu.pipeline_mode<synchronous>, transform_indices = @transform_2, window_bounds = array<i64: 32, 128>}, {pipeline_mode = #tpu.pipeline_mode<synchronous>, transform_indices = @transform_3, window_bounds = array<i64: 64, 32>}, {transform_indices = @transform_4, window_bounds = array<i64: 16, 32>}]} {
    %c0 = arith.constant 0 : index
    %0 = memref.load %arg1[%c0] : memref<2xf32, #tpu.memory_space<smem>>
    %c1 = arith.constant 1 : index
    %1 = memref.load %arg1[%c1] : memref<2xf32, #tpu.memory_space<smem>>
    %c0_0 = arith.constant 0 : index
    %c0_1 = arith.constant 0 : index
    %2 = vector.load %arg2[%c0_0, %c0_1] : memref<16x32xf32, #tpu.memory_space<vmem>>, vector<16x32xf32>
    %3 = math.absf %2 : vector<16x32xf32>
    %cst = arith.constant dense<0.000000e+00> : vector<16xf32>
    %4 = vector.multi_reduction <add>, %3, %cst [1] : vector<16x32xf32> to vector<16xf32>
    %5 = vector.shape_cast %4 : vector<16xf32> to vector<16x1xf32>
    %cst_2 = arith.constant 3.200000e+01 : f32
    %6 = vector.broadcast %cst_2 : f32 to vector<16x1xf32>
    %7 = arith.divf %5, %6 : vector<16x1xf32>
    %cst_3 = arith.constant 9.99999974E-6 : f32
    %8 = vector.broadcast %cst_3 : f32 to vector<16x1xf32>
    %9 = arith.addf %7, %8 : vector<16x1xf32>
    %cst_4 = arith.constant 2.64575124 : f32
    %10 = vector.broadcast %cst_4 : f32 to vector<16x1xf32>
    %11 = arith.divf %10, %9 : vector<16x1xf32>
    %12 = vector.broadcast %11 : vector<16x1xf32> to vector<16x32xf32>
    %13 = arith.mulf %2, %12 : vector<16x32xf32>
    %14 = math.roundeven %13 : vector<16x32xf32>
    %cst_5 = arith.constant -8.000000e+00 : f32
    %cst_6 = arith.constant 7.000000e+00 : f32
    %15 = vector.broadcast %cst_5 : f32 to vector<16x32xf32>
    %16 = arith.maximumf %15, %14 : vector<16x32xf32>
    %17 = vector.broadcast %cst_6 : f32 to vector<16x32xf32>
    %18 = arith.minimumf %17, %16 : vector<16x32xf32>
    %19 = arith.truncf %18 : vector<16x32xf32> to vector<16x32xbf16>
    %c0_7 = arith.constant 0 : index
    %c0_8 = arith.constant 0 : index
    %20 = vector.load %arg3[%c0_7, %c0_8] : memref<32x128xbf16, #tpu.memory_space<vmem>>, vector<32x128xbf16>
    %cst_9 = arith.constant dense<0.000000e+00> : vector<16x128xf32>
    %21 = tpu.matmul %19, %20, %cst_9 {dimension_numbers = #tpu.dot_dimension_numbers<[1], [0], [0], [1], [0, 0, 1, 1], [], []>} : vector<16x32xbf16>, vector<32x128xbf16>, vector<16x128xf32> -> vector<16x128xf32>
    %22 = vector.extract_strided_slice %21 {offsets = [0, 0], sizes = [16, 64], strides = [1, 1]} : vector<16x128xf32> to vector<16x64xf32>
    %23 = vector.extract_strided_slice %21 {offsets = [0, 64], sizes = [16, 64], strides = [1, 1]} : vector<16x128xf32> to vector<16x64xf32>
    %cst_10 = arith.constant 0.000000e+00 : f32
    %24 = vector.broadcast %cst_10 : f32 to vector<16x64xf32>
    %25 = arith.maximumf %22, %24 : vector<16x64xf32>
    %26 = arith.mulf %25, %25 : vector<16x64xf32>
    %27 = arith.mulf %23, %26 : vector<16x64xf32>
    %28 = math.absf %27 : vector<16x64xf32>
    %cst_11 = arith.constant dense<0xFF800000> : vector<16xf32>
    %29 = vector.multi_reduction <maximumf>, %28, %cst_11 [1] : vector<16x64xf32> to vector<16xf32>
    %30 = vector.shape_cast %29 : vector<16xf32> to vector<16x1xf32>
    %31 = arith.mulf %7, %7 : vector<16x1xf32>
    %32 = arith.mulf %31, %7 : vector<16x1xf32>
    %33 = vector.broadcast %0 : f32 to vector<16x1xf32>
    %34 = arith.mulf %32, %33 : vector<16x1xf32>
    %35 = arith.mulf %34, %30 : vector<16x1xf32>
    %cst_12 = arith.constant 1.270000e+02 : f32
    %36 = vector.broadcast %cst_12 : f32 to vector<16x1xf32>
    %37 = arith.mulf %36, %34 : vector<16x1xf32>
    %cst_13 = arith.constant 9.99999974E-6 : f32
    %38 = vector.broadcast %cst_13 : f32 to vector<16x1xf32>
    %39 = arith.addf %35, %38 : vector<16x1xf32>
    %40 = arith.divf %37, %39 : vector<16x1xf32>
    %41 = vector.broadcast %40 : vector<16x1xf32> to vector<16x64xf32>
    %42 = arith.mulf %27, %41 : vector<16x64xf32>
    %43 = math.roundeven %42 : vector<16x64xf32>
    %cst_14 = arith.constant -1.280000e+02 : f32
    %cst_15 = arith.constant 1.270000e+02 : f32
    %44 = vector.broadcast %cst_14 : f32 to vector<16x64xf32>
    %45 = arith.maximumf %44, %43 : vector<16x64xf32>
    %46 = vector.broadcast %cst_15 : f32 to vector<16x64xf32>
    %47 = arith.minimumf %46, %45 : vector<16x64xf32>
    %48 = arith.truncf %47 : vector<16x64xf32> to vector<16x64xbf16>
    %c0_16 = arith.constant 0 : index
    %c0_17 = arith.constant 0 : index
    %49 = vector.load %arg4[%c0_16, %c0_17] : memref<64x32xbf16, #tpu.memory_space<vmem>>, vector<64x32xbf16>
    %cst_18 = arith.constant dense<0.000000e+00> : vector<16x32xf32>
    %50 = tpu.matmul %48, %49, %cst_18 {dimension_numbers = #tpu.dot_dimension_numbers<[1], [0], [0], [1], [0, 0, 1, 1], [], []>} : vector<16x64xbf16>, vector<64x32xbf16>, vector<16x32xf32> -> vector<16x32xf32>
    %51 = vector.broadcast %1 : f32 to vector<16x1xf32>
    %52 = arith.mulf %35, %51 : vector<16x1xf32>
    %53 = vector.broadcast %52 : vector<16x1xf32> to vector<16x32xf32>
    %54 = arith.mulf %50, %53 : vector<16x32xf32>
    %c0_19 = arith.constant 0 : index
    %c0_20 = arith.constant 0 : index
    %55 = vector.load %arg5[%c0_19, %c0_20] : memref<16x32xf32, #tpu.memory_space<vmem>>, vector<16x32xf32>
    tpu.vector_store %arg5[%c0_19, %c0_20], %54 {strides = array<i32>} : memref<16x32xf32, #tpu.memory_space<vmem>>, vector<16x32xf32>,
    return
  }
  func.func @transform_0(%arg0: i32) -> i32 {
    %c0_i32 = arith.constant 0 : i32
    %c0_i32_0 = arith.constant 0 : i32
    return %c0_i32 : i32
  }
  func.func @transform_1(%arg0: i32) -> (i32, i32) {
    %c0_i32 = arith.constant 0 : i32
    %c0_i32_0 = arith.constant 0 : i32
    return %arg0, %c0_i32 : i32, i32
  }
  func.func @transform_2(%arg0: i32) -> (i32, i32) {
    %c0_i32 = arith.constant 0 : i32
    %c0_i32_0 = arith.constant 0 : i32
    %c0_i32_1 = arith.constant 0 : i32
    return %c0_i32, %c0_i32_0 : i32, i32
  }
  func.func @transform_3(%arg0: i32) -> (i32, i32) {
    %c0_i32 = arith.constant 0 : i32
    %c0_i32_0 = arith.constant 0 : i32
    %c0_i32_1 = arith.constant 0 : i32
    return %c0_i32, %c0_i32_0 : i32, i32
  }
  func.func @transform_4(%arg0: i32) -> (i32, i32) {
    %c0_i32 = arith.constant 0 : i32
    %c0_i32_0 = arith.constant 0 : i32
    return %arg0, %c0_i32 : i32, i32
  }
}

module attributes {stable_mosaic.version = 11 : i64} {
  func.func @bitnet_mlp_kernel(%arg0: i32, %arg1: memref<2xf32, #tpu.memory_space<smem>>, %arg2: memref<16x32xf32, #tpu.memory_space<vmem>>, %arg3: memref<32x128xbf16, #tpu.memory_space<vmem>>, %arg4: memref<64x32xbf16, #tpu.memory_space<vmem>>, %arg5: memref<16x32xf32, #tpu.memory_space<vmem>>) attributes {dimension_semantics = [#tpu.dimension_semantics<parallel>], iteration_bounds = array<i64: 1>, scalar_prefetch = 0 : i64, scratch_operands = 0 : i64, tpu.core_type = #tpu.core_type<tc>, window_params = [{transform_indices = @transform_0, window_bounds = array<i64: 2>}, {transform_indices = @transform_1, window_bounds = array<i64: 16, 32>}, {pipeline_mode = #tpu.pipeline_mode<synchronous>, transform_indices = @transform_2, window_bounds = array<i64: 32, 128>}, {pipeline_mode = #tpu.pipeline_mode<synchronous>, transform_indices = @transform_3, window_bounds = array<i64: 64, 32>}, {transform_indices = @transform_4, window_bounds = array<i64: 16, 32>}]} {
    %c0 = arith.constant 0 : index
    %0 = memref.load %arg1[%c0] : memref<2xf32, #tpu.memory_space<smem>>
    %c1 = arith.constant 1 : index
    %1 = memref.load %arg1[%c1] : memref<2xf32, #tpu.memory_space<smem>>
    %c0_0 = arith.constant 0 : index
    %c0_1 = arith.constant 0 : index
    %2 = vector.load %arg2[%c0_0, %c0_1] : memref<16x32xf32, #tpu.memory_space<vmem>>, vector<16x32xf32>
    %3 = math.absf %2 : vector<16x32xf32>
    %cst = arith.constant dense<0.000000e+00> : vector<16xf32>
    %4 = vector.multi_reduction <add>, %3, %cst [1] : vector<16x32xf32> to vector<16xf32>
    %5 = vector.shape_cast %4 : vector<16xf32> to vector<16x1xf32>
    %cst_2 = arith.constant 3.200000e+01 : f32
    %6 = vector.broadcast %cst_2 : f32 to vector<16x1xf32>
    %7 = arith.divf %5, %6 : vector<16x1xf32>
    %cst_3 = arith.constant 9.99999974E-6 : f32
    %8 = vector.broadcast %cst_3 : f32 to vector<16x1xf32>
    %9 = arith.addf %7, %8 : vector<16x1xf32>
    %cst_4 = arith.constant 2.64575124 : f32
    %10 = vector.broadcast %cst_4 : f32 to vector<16x1xf32>
    %11 = arith.divf %10, %9 : vector<16x1xf32>
    %12 = vector.broadcast %11 : vector<16x1xf32> to vector<16x32xf32>
    %13 = arith.mulf %2, %12 : vector<16x32xf32>
    %14 = math.roundeven %13 : vector<16x32xf32>
    %cst_5 = arith.constant -8.000000e+00 : f32
    %cst_6 = arith.constant 7.000000e+00 : f32
    %15 = vector.broadcast %cst_5 : f32 to vector<16x32xf32>
    %16 = arith.maximumf %15, %14 : vector<16x32xf32>
    %17 = vector.broadcast %cst_6 : f32 to vector<16x32xf32>
    %18 = arith.minimumf %17, %16 : vector<16x32xf32>
    %19 = arith.truncf %18 : vector<16x32xf32> to vector<16x32xbf16>
    %c0_7 = arith.constant 0 : index
    %c0_8 = arith.constant 0 : index
    %20 = vector.load %arg3[%c0_7, %c0_8] : memref<32x128xbf16, #tpu.memory_space<vmem>>, vector<32x128xbf16>
    %cst_9 = arith.constant dense<0.000000e+00> : vector<16x128xf32>
    %21 = tpu.matmul %19, %20, %cst_9 {dimension_numbers = #tpu.dot_dimension_numbers<[1], [0], [0], [1], [0, 0, 1, 1], [], []>} : vector<16x32xbf16>, vector<32x128xbf16>, vector<16x128xf32> -> vector<16x128xf32>
    %22 = vector.extract_strided_slice %21 {offsets = [0, 0], sizes = [16, 64], strides = [1, 1]} : vector<16x128xf32> to vector<16x64xf32>
    %23 = vector.extract_strided_slice %21 {offsets = [0, 64], sizes = [16, 64], strides = [1, 1]} : vector<16x128xf32> to vector<16x64xf32>
    %cst_10 = arith.constant 0.000000e+00 : f32
    %24 = vector.broadcast %cst_10 : f32 to vector<16x64xf32>
    %25 = arith.maximumf %22, %24 : vector<16x64xf32>
    %26 = arith.mulf %25, %25 : vector<16x64xf32>
    %27 = arith.mulf %23, %26 : vector<16x64xf32>
    %28 = math.absf %27 : vector<16x64xf32>
    %cst_11 = arith.constant dense<0xFF800000> : vector<16xf32>
    %29 = vector.multi_reduction <maximumf>, %28, %cst_11 [1] : vector<16x64xf32> to vector<16xf32>
    %30 = vector.shape_cast %29 : vector<16xf32> to vector<16x1xf32>
    %31 = arith.mulf %7, %7 : vector<16x1xf32>
    %32 = arith.mulf %31, %7 : vector<16x1xf32>
    %33 = vector.broadcast %0 : f32 to vector<16x1xf32>
    %34 = arith.mulf %32, %33 : vector<16x1xf32>
    %35 = arith.mulf %34, %30 : vector<16x1xf32>
    %cst_12 = arith.constant 1.270000e+02 : f32
    %36 = vector.broadcast %cst_12 : f32 to vector<16x1xf32>
    %37 = arith.mulf %36, %34 : vector<16x1xf32>
    %cst_13 = arith.constant 9.99999974E-6 : f32
    %38 = vector.broadcast %cst_13 : f32 to vector<16x1xf32>
    %39 = arith.addf %35, %38 : vector<16x1xf32>
    %40 = arith.divf %37, %39 : vector<16x1xf32>
    %41 = vector.broadcast %40 : vector<16x1xf32> to vector<16x64xf32>
    %42 = arith.mulf %27, %41 : vector<16x64xf32>
    %43 = math.roundeven %42 : vector<16x64xf32>
    %cst_14 = arith.constant -1.280000e+02 : f32
    %cst_15 = arith.constant 1.270000e+02 : f32
    %44 = vector.broadcast %cst_14 : f32 to vector<16x64xf32>
    %45 = arith.maximumf %44, %43 : vector<16x64xf32>
    %46 = vector.broadcast %cst_15 : f32 to vector<16x64xf32>
    %47 = arith.minimumf %46, %45 : vector<16x64xf32>
    %48 = arith.truncf %47 : vector<16x64xf32> to vector<16x64xbf16>
    %c0_16 = arith.constant 0 : index
    %c0_17 = arith.constant 0 : index
    %49 = vector.load %arg4[%c0_16, %c0_17] : memref<64x32xbf16, #tpu.memory_space<vmem>>, vector<64x32xbf16>
    %cst_18 = arith.constant dense<0.000000e+00> : vector<16x32xf32>
    %50 = tpu.matmul %48, %49, %cst_18 {dimension_numbers = #tpu.dot_dimension_numbers<[1], [0], [0], [1], [0, 0, 1, 1], [], []>} : vector<16x64xbf16>, vector<64x32xbf16>, vector<16x32xf32> -> vector<16x32xf32>
    %51 = vector.broadcast %1 : f32 to vector<16x1xf32>
    %52 = arith.mulf %35, %51 : vector<16x1xf32>
    %53 = vector.broadcast %52 : vector<16x1xf32> to vector<16x32xf32>
    %54 = arith.mulf %50, %53 : vector<16x32xf32>
    %c0_19 = arith.constant 0 : index
    %c0_20 = arith.constant 0 : index
    %55 = vector.load %arg5[%c0_19, %c0_20] : memref<16x32xf32, #tpu.memory_space<vmem>>, vector<16x32xf32>
    tpu.vector_store %arg5[%c0_19, %c0_20], %54 {strides = array<i32>} : memref<16x32xf32, #tpu.memory_space<vmem>>, vector<16x32xf32>,
    return
  }
  func.func @transform_0(%arg0: i32) -> i32 {
    %c0_i32 = arith.constant 0 : i32
    %c0_i32_0 = arith.constant 0 : i32
    return %c0_i32 : i32
  }
  func.func @transform_1(%arg0: i32) -> (i32, i32) {
    %c0_i32 = arith.constant 0 : i32
    %c0_i32_0 = arith.constant 0 : i32
    return %arg0, %c0_i32 : i32, i32
  }
  func.func @transform_2(%arg0: i32) -> (i32, i32) {
    %c0_i32 = arith.constant 0 : i32
    %c0_i32_0 = arith.constant 0 : i32
    %c0_i32_1 = arith.constant 0 : i32
    return %c0_i32, %c0_i32_0 : i32, i32
  }
  func.func @transform_3(%arg0: i32) -> (i32, i32) {
    %c0_i32 = arith.constant 0 : i32
    %c0_i32_0 = arith.constant 0 : i32
    %c0_i32_1 = arith.constant 0 : i32
    return %c0_i32, %c0_i32_0 : i32, i32
  }
  func.func @transform_4(%arg0: i32) -> (i32, i32) {
    %c0_i32 = arith.constant 0 : i32
    %c0_i32_0 = arith.constant 0 : i32
    return %arg0, %c0_i32 : i32, i32
  }
}

</mosaic_0001>

<llo_original>
// kernel: tpu_custom_call.1
$region0: #{tpu_custom_call.1}
  #allocation0 [shape = 'u32[]', space=smem, size = 0x4, offset = 0x4, fixed_abs, tag = 'smem constant byte address 0x4 - core index']
  #allocation1 [shape = 'u32[72,128]{1,0:T(1,128)}', space=vmem, size = 0x9000, scoped, tag = 'internal scratch']
  %s0 = inlined_call_operand.vmem [shape: f32[2], index: 0, kind: input, shape index: {}]
  %s1 = inlined_call_operand.vmem [shape: f32[16,32], index: 1, kind: input, shape index: {}]
  %s2 = inlined_call_operand.vmem [shape: bf16[32,128], index: 2, kind: input, shape index: {}]
  %s3 = inlined_call_operand.vmem [shape: bf16[64,32], index: 3, kind: input, shape index: {}]
  %s4 = inlined_call_operand.hbm [shape: f32[16,32], index: 4, kind: output, shape index: {}]
  %s5 = sld [smem:[#allocation0]]
  $region30: #{tpu_custom_call.1} parent=0
    _
  %s7 = ssub.s32 1, %s5
  %s8 = scalar_select 0, %s7, %s5
  $region1: #{tpu_custom_call.1} parent=0
    #allocation2 [shape = 'u8[512]{0}', space=smem, size = 0x200, scoped, tag = 'input window, operand 0, single buffered']
    #allocation3 [shape = 's32[1]{0}', space=sflag, size = 0x4, scoped, tag = 'scoped memory for tpu_custom_call.1']
    #allocation4 [shape = 's32[1]{0}', space=sflag, size = 0x4, scoped, tag = 'scoped memory for tpu_custom_call.1']
    #allocation5 [shape = 'u8[8192]{0}', space=vmem, size = 0x2000, scoped, tag = 'output window, operand 0, single buffered']
    %9 = vsyncpa [#allocation4], 0
    %10 = vsyncpa [#allocation3], 0
    // Predicated region
    $region2: #{tpu_custom_call.1} parent=1 // pred_check
      _
    $region3: #{tpu_custom_call.1} parent=1 // pred_check_branch
      %12 = sbr.rel (0) target = $region5
    $region4: #{tpu_custom_call.1} parent=1 // pred_region
      %14 = vsyncadd [#allocation4], 0
      %s16 = sshll.u32 %s0, 4
      %s17 = int_to_ptr.vmem [resolvable:$true] %s16
      %19 = dma.vmem_to_smem %s17, 16, [#allocation2], [#allocation4]
    $region5: #{tpu_custom_call.1} parent=1 // pred_fallthru
      _
    // Predicated region
    $region6: #{tpu_custom_call.1} parent=1 // pred_check
      _
    $region7: #{tpu_custom_call.1} parent=1 // pred_check_branch
      %21 = sbr.rel (0) target = $region9
    $region8: #{tpu_custom_call.1} parent=1 // pred_region
      _
    $region9: #{tpu_custom_call.1} parent=1 // pred_fallthru
      _
    // Predicated region
    $region10: #{tpu_custom_call.1} parent=1 // pred_check
      _
    $region11: #{tpu_custom_call.1} parent=1 // pred_check_branch
      %23 = sbr.rel (0) target = $region13
    $region12: #{tpu_custom_call.1} parent=1 // pred_region
      _
    $region13: #{tpu_custom_call.1} parent=1 // pred_fallthru
      _
    // Predicated region
    $region14: #{tpu_custom_call.1} parent=1 // pred_check
      _
    $region15: #{tpu_custom_call.1} parent=1 // pred_check_branch
      %25 = sbr.rel (0) target = $region17
    $region16: #{tpu_custom_call.1} parent=1 // pred_region
      _
    $region17: #{tpu_custom_call.1} parent=1 // pred_fallthru
      _
    // Predicated region
    $region18: #{tpu_custom_call.1} parent=1 // pred_check
      _
    $region19: #{tpu_custom_call.1} parent=1 // pred_check_branch
      %27 = sbr.rel (0) target = $region21
    $region20: #{tpu_custom_call.1} parent=1 // pred_region
      %29 = dma.done [#allocation4], 16
    $region21: #{tpu_custom_call.1} parent=1 // pred_fallthru
      _
    %30 = sfence
    %s32 = sld [smem:[#allocation2]]
    %s33 = sld [smem:[#allocation2 + $0x1]]
    %v34 = vld [vmem:[%s1] sm:$0xff]
    %v35 = vld [vmem:[%s1 + $0x8] sm:$0xff]
    %v36 = vand.u32 2147483647, %v34
    %v37 = vand.u32 2147483647, %v35
    %vm38 = vcmask 261120
    %v39 = vsel %vm38, %v36, 0.0
    %40 = vadd.xlane.f32.xlu0 %v39
    %v41 = vpop.xlane.xlu0 %40
    %v42 = vsel %vm38, %v37, 0.0
    %43 = vadd.xlane.f32.xlu0 %v42
    %v44 = vpop.xlane.xlu0 %43
    %v45 = vrcp.pop 32.0
    %v46 = vmul.f32 32.0, %v45
    %v47 = vsub.f32 1.0, %v46
    %v48 = vmul.f32 %v45, %v47
    %v49 = vadd.f32 %v45, %v48
    %vm50 = vweird.f32 %v45
    %v51 = vsel %vm50, %v45, %v49
    %v52 = vmul.f32 %v41, %v51
    %v53 = vmul.f32 %v44, %v51
    %v54 = vadd.f32 %v52, 1e-05
    %v55 = vadd.f32 %v53, 1e-05
    %v56 = vrcp.pop %v54
    %v57 = vmul.f32 %v54, %v56
    %v58 = vsub.f32 1.0, %v57
    %v59 = vmul.f32 %v56, %v58
    %v60 = vadd.f32 %v56, %v59
    %vm61 = vweird.f32 %v54
    %vm62 = vweird.f32 %v56
    %vm63 = vmor %vm61, %vm62
    %v64 = vsel %vm63, %v56, %v60
    %v65 = vand.u32 2147483647, %v54
    %vm66 = vcmp.eq.f32.partialorder %v65, 8.507059e+37
    %v67 = vand.u32 %v54, 2147483648
    %v68 = vor.u32 1.1754944e-38, %v67
    %v69 = vsel %vm66, %v68, %v64
    %v70 = vmul.f32 2.6457512, %v69
    %v71 = vrcp.pop %v55
    %v72 = vmul.f32 %v55, %v71
    %v73 = vsub.f32 1.0, %v72
    %v74 = vmul.f32 %v71, %v73
    %v75 = vadd.f32 %v71, %v74
    %vm76 = vweird.f32 %v55
    %vm77 = vweird.f32 %v71
    %vm78 = vmor %vm76, %vm77
    %v79 = vsel %vm78, %v71, %v75
    %v80 = vand.u32 2147483647, %v55
    %vm81 = vcmp.eq.f32.partialorder %v80, 8.507059e+37
    %v82 = vand.u32 %v55, 2147483648
    %v83 = vor.u32 1.1754944e-38, %v82
    %v84 = vsel %vm81, %v83, %v79
    %v85 = vmul.f32 2.6457512, %v84
    %v86 = vmul.f32 %v34, %v70
    %v87 = vmul.f32 %v35, %v85
    %v88 = vround.ne.pseudo %v86
    %v89 = vround.ne.pseudo %v87
    %v90 = vmax.f32 %v88, -8.0
    %v91 = vmax.f32 %v89, -8.0
    %v92 = vmin.f32 %v90, 7.0
    %v93 = vmin.f32 %v91, 7.0
    %v94 = vpack.c.bf16 %v93, %v92
    %v95 = vld [vmem:[%s2] sm:$0xf]
    %v96 = vld [vmem:[%s2 + $0x4] sm:$0xf]
    %v97 = vld [vmem:[%s2 + $0x8] sm:$0xf]
    %v98 = vld [vmem:[%s2 + $0xc] sm:$0xf]
    %v103 = vunpack.c.l.b16 %v95
    %v104 = vunpack.c.l.b16 %v96
    %v105 = vunpack.c.l.b16 %v97
    %v106 = vunpack.c.l.b16 %v98
    %v107 = vpack.c.b16 %v104, %v103
    %v108 = vpack.c.b16 %v106, %v105
    %v112 = vsel %vm38, %v94, 0
    %114 = vmatpush.bf16.msra.mxu0 0
    %115 = vmatpush.bf16.msra.mxu0 0
    %116 = vmatpush.bf16.msra.mxu0 0
    %117 = vmatpush.bf16.msra.mxu0 0
    %118 = vmatpush.bf16.msra.mxu0 0
    %119 = vmatpush.bf16.msra.mxu0 0
    %120 = vmatpush.bf16.msra.mxu0 %v108
    %121 = vmatpush.bf16.msra.mxu0 %v107
    %122 = vmatmul.bf16.gmra.mxu0 %v112
    %v123 = vpop.f32.mrf.mxu0
    %v124 = vadd.f32 0.0, %v123
    %v125 = vpop.f32.mrf.mxu0
    %v126 = vadd.f32 0.0, %v125
    %127 = vdwg.mxu0
    %v128 = vmax.f32 %v124, 0.0
    %v129 = vmax.f32 %v126, 0.0
    %v130 = vmul.f32 %v128, %v128
    %v131 = vmul.f32 %v129, %v129
    %134 = vrot.lane.b32.xlu0 %v130, 64
    %v135 = vpop.permute.xlu0 %134
    %136 = vrot.lane.b32.xlu0 %v131, 64
    %v137 = vpop.permute.xlu0 %136
    %v140 = vmul.f32 %v124, %v135
    %v141 = vmul.f32 %v126, %v137
    %v142 = vand.u32 2147483647, %v140
    %v143 = vand.u32 2147483647, %v141
    %vm144 = vcmask 1048064
    %v145 = vsel %vm144, %v142, -inf
    %146 = vmax.xlane.f32.xlu0 %v145
    %v147 = vpop.xlane.xlu0 %146
    %v148 = vsel %vm144, %v143, -inf
    %149 = vmax.xlane.f32.xlu0 %v148
    %v150 = vpop.xlane.xlu0 %149
    %v151 = vmul.f32 %v52, %v52
    %v152 = vmul.f32 %v53, %v53
    %v153 = vmul.f32 %v151, %v52
    %v154 = vmul.f32 %v152, %v53
    %v155 = vstv %s32
    %v156 = vmul.f32 %v153, %v155
    %v157 = vmul.f32 %v154, %v155
    %v158 = vmul.f32 %v156, %v147
    %v159 = vmul.f32 %v157, %v150
    %v160 = vmul.f32 %v156, 127.0
    %v161 = vmul.f32 %v157, 127.0
    %v162 = vadd.f32 %v158, 1e-05
    %v163 = vadd.f32 %v159, 1e-05
    %v164 = vrcp.pop %v162
    %v165 = vmul.f32 %v162, %v164
    %v166 = vsub.f32 1.0, %v165
    %v167 = vmul.f32 %v164, %v166
    %v168 = vadd.f32 %v164, %v167
    %vm169 = vweird.f32 %v162
    %vm170 = vweird.f32 %v164
    %vm171 = vmor %vm169, %vm170
    %v172 = vsel %vm171, %v164, %v168
    %v173 = vand.u32 2147483647, %v162
    %vm174 = vcmp.eq.f32.partialorder %v173, 8.507059e+37
    %v175 = vand.u32 %v162, 2147483648
    %v176 = vor.u32 1.1754944e-38, %v175
    %v177 = vsel %vm174, %v176, %v172
    %v178 = vmul.f32 %v160, %v177
    %v179 = vrcp.pop %v163
    %v180 = vmul.f32 %v163, %v179
    %v181 = vsub.f32 1.0, %v180
    %v182 = vmul.f32 %v179, %v181
    %v183 = vadd.f32 %v179, %v182
    %vm184 = vweird.f32 %v163
    %vm185 = vweird.f32 %v179
    %vm186 = vmor %vm184, %vm185
    %v187 = vsel %vm186, %v179, %v183
    %v188 = vand.u32 2147483647, %v163
    %vm189 = vcmp.eq.f32.partialorder %v188, 8.507059e+37
    %v190 = vand.u32 %v163, 2147483648
    %v191 = vor.u32 1.1754944e-38, %v190
    %v192 = vsel %vm189, %v191, %v187
    %v193 = vmul.f32 %v161, %v192
    %v194 = vmul.f32 %v140, %v178
    %v195 = vmul.f32 %v141, %v193
    %v196 = vround.ne.pseudo %v194
    %v197 = vround.ne.pseudo %v195
    %v198 = vmax.f32 %v196, -128.0
    %v199 = vmax.f32 %v197, -128.0
    %v200 = vmin.f32 %v198, 127.0
    %v201 = vmin.f32 %v199, 127.0
    %v202 = vpack.c.bf16 %v201, %v200
    %v203 = vld [vmem:[%s3] sm:$0xf]
    %v204 = vld [vmem:[%s3 + $0x4] sm:$0xf]
    %v205 = vld [vmem:[%s3 + $0x8] sm:$0xf]
    %v206 = vld [vmem:[%s3 + $0xc] sm:$0xf]
    %v207 = vld [vmem:[%s3 + $0x10] sm:$0xf]
    %v208 = vld [vmem:[%s3 + $0x14] sm:$0xf]
    %v209 = vld [vmem:[%s3 + $0x18] sm:$0xf]
    %v210 = vld [vmem:[%s3 + $0x1c] sm:$0xf]
    %212 = vrot.lane.b32.xlu0 %v202, 64
    %v213 = vpop.permute.xlu0 %212
    %v222 = vunpack.c.l.b16 %v203
    %v223 = vunpack.c.l.b16 %v204
    %v224 = vunpack.c.l.b16 %v205
    %v225 = vunpack.c.l.b16 %v206
    %v226 = vunpack.c.l.b16 %v207
    %v227 = vunpack.c.l.b16 %v208
    %v228 = vunpack.c.l.b16 %v209
    %v229 = vunpack.c.l.b16 %v210
    %v230 = vpack.c.b16 %v223, %v222
    %v231 = vpack.c.b16 %v225, %v224
    %v232 = vpack.c.b16 %v227, %v226
    %v233 = vpack.c.b16 %v229, %v228
    %vm238 = vcmask 523264
    %v240 = vsel %vm238, %v213, 0
    %242 = vmatpush.bf16.msra.mxu0 0
    %243 = vmatpush.bf16.msra.mxu0 0
    %244 = vmatpush.bf16.msra.mxu0 0
    %245 = vmatpush.bf16.msra.mxu0 0
    %246 = vmatpush.bf16.msra.mxu0 %v233
    %247 = vmatpush.bf16.msra.mxu0 %v232
    %248 = vmatpush.bf16.msra.mxu0 %v231
    %249 = vmatpush.bf16.msra.mxu0 %v230
    %250 = vmatmul.bf16.gmra.mxu0 %v240
    %v251 = vpop.f32.mrf.mxu0
    %v252 = vadd.f32 0.0, %v251
    %v253 = vpop.f32.mrf.mxu0
    %v254 = vadd.f32 0.0, %v253
    %255 = vdwg.mxu0
    %v256 = vstv %s33
    %v257 = vmul.f32 %v158, %v256
    %v258 = vmul.f32 %v159, %v256
    %v259 = vmul.f32 %v252, %v257
    %v260 = vmul.f32 %v254, %v258
    %261 = vst.msk [vmem:[#allocation5] sm:$0xff] %vm38, %v259
    %262 = vst.msk [vmem:[#allocation5 + $0x8] sm:$0xff] %vm38, %v260
    // Predicated region
    $region22: #{tpu_custom_call.1} parent=1 // pred_check
      _
    $region23: #{tpu_custom_call.1} parent=1 // pred_check_branch
      %264 = sbr.rel (0) target = $region25
    $region24: #{tpu_custom_call.1} parent=1 // pred_region
      %266 = vsyncadd [#allocation3], 0
      %s267 = sshll.u32 [#allocation5], 4
      %s268 = int_to_ptr.vmem [resolvable:$true] %s267
      %s269 = sshll.u32 %s4, 4
      %s270 = int_to_ptr.hbm [resolvable:$true] %s269
      %275 = dma.vmem_to_hbm [thread:$0]  %s268, 256, %s270, [#allocation3], 128, 128, 8
    $region25: #{tpu_custom_call.1} parent=1 // pred_fallthru
      _
    // Predicated region
    $region26: #{tpu_custom_call.1} parent=1 // pred_check
      _
    $region27: #{tpu_custom_call.1} parent=1 // pred_check_branch
      %277 = sbr.rel (0) target = $region29
    $region28: #{tpu_custom_call.1} parent=1 // pred_region
      %279 = dma.done [#allocation3], 256
    $region29: #{tpu_custom_call.1} parent=1 // pred_fallthru
      _
    %280 = vsyncpa [#allocation3], 1
    %281 = vsyncpa [#allocation4], 1

// kernel: tpu_custom_call.1
$region0: #{tpu_custom_call.1}
  #allocation0 [shape = 'u32[]', space=smem, size = 0x4, offset = 0x4, fixed_abs, tag = 'smem constant byte address 0x4 - core index']
  #allocation1 [shape = 'u32[72,128]{1,0:T(1,128)}', space=vmem, size = 0x9000, scoped, tag = 'internal scratch']
  %s0 = inlined_call_operand.vmem [shape: f32[2], index: 0, kind: input, shape index: {}]
  %s1 = inlined_call_operand.vmem [shape: f32[16,32], index: 1, kind: input, shape index: {}]
  %s2 = inlined_call_operand.vmem [shape: bf16[32,128], index: 2, kind: input, shape index: {}]
  %s3 = inlined_call_operand.vmem [shape: bf16[64,32], index: 3, kind: input, shape index: {}]
  %s4 = inlined_call_operand.hbm [shape: f32[16,32], index: 4, kind: output, shape index: {}]
  %s5 = sld [smem:[#allocation0]]
  $region30: #{tpu_custom_call.1} parent=0
    _
  %s7 = ssub.s32 1, %s5
  %s8 = scalar_select 0, %s7, %s5
  $region1: #{tpu_custom_call.1} parent=0
    #allocation2 [shape = 'u8[512]{0}', space=smem, size = 0x200, scoped, tag = 'input window, operand 0, single buffered']
    #allocation3 [shape = 's32[1]{0}', space=sflag, size = 0x4, scoped, tag = 'scoped memory for tpu_custom_call.1']
    #allocation4 [shape = 's32[1]{0}', space=sflag, size = 0x4, scoped, tag = 'scoped memory for tpu_custom_call.1']
    #allocation5 [shape = 'u8[8192]{0}', space=vmem, size = 0x2000, scoped, tag = 'output window, operand 0, single buffered']
    %9 = vsyncpa [#allocation4], 0
    %10 = vsyncpa [#allocation3], 0
    // Predicated region
    $region2: #{tpu_custom_call.1} parent=1 // pred_check
      _
    $region3: #{tpu_custom_call.1} parent=1 // pred_check_branch
      %12 = sbr.rel (0) target = $region5
    $region4: #{tpu_custom_call.1} parent=1 // pred_region
      %14 = vsyncadd [#allocation4], 0
      %s16 = sshll.u32 %s0, 4
      %s17 = int_to_ptr.vmem [resolvable:$true] %s16
      %19 = dma.vmem_to_smem %s17, 16, [#allocation2], [#allocation4]
    $region5: #{tpu_custom_call.1} parent=1 // pred_fallthru
      _
    // Predicated region
    $region6: #{tpu_custom_call.1} parent=1 // pred_check
      _
    $region7: #{tpu_custom_call.1} parent=1 // pred_check_branch
      %21 = sbr.rel (0) target = $region9
    $region8: #{tpu_custom_call.1} parent=1 // pred_region
      _
    $region9: #{tpu_custom_call.1} parent=1 // pred_fallthru
      _
    // Predicated region
    $region10: #{tpu_custom_call.1} parent=1 // pred_check
      _
    $region11: #{tpu_custom_call.1} parent=1 // pred_check_branch
      %23 = sbr.rel (0) target = $region13
    $region12: #{tpu_custom_call.1} parent=1 // pred_region
      _
    $region13: #{tpu_custom_call.1} parent=1 // pred_fallthru
      _
    // Predicated region
    $region14: #{tpu_custom_call.1} parent=1 // pred_check
      _
    $region15: #{tpu_custom_call.1} parent=1 // pred_check_branch
      %25 = sbr.rel (0) target = $region17
    $region16: #{tpu_custom_call.1} parent=1 // pred_region
      _
    $region17: #{tpu_custom_call.1} parent=1 // pred_fallthru
      _
    // Predicated region
    $region18: #{tpu_custom_call.1} parent=1 // pred_check
      _
    $region19: #{tpu_custom_call.1} parent=1 // pred_check_branch
      %27 = sbr.rel (0) target = $region21
    $region20: #{tpu_custom_call.1} parent=1 // pred_region
      %29 = dma.done [#allocation4], 16
    $region21: #{tpu_custom_call.1} parent=1 // pred_fallthru
      _
    %30 = sfence
    %s32 = sld [smem:[#allocation2]]
    %s33 = sld [smem:[#allocation2 + $0x1]]
    %v34 = vld [vmem:[%s1] sm:$0xff]
    %v35 = vld [vmem:[%s1 + $0x8] sm:$0xff]
    %v36 = vand.u32 2147483647, %v34
    %v37 = vand.u32 2147483647, %v35
    %vm38 = vcmask 261120
    %v39 = vsel %vm38, %v36, 0.0
    %40 = vadd.xlane.f32.xlu0 %v39
    %v41 = vpop.xlane.xlu0 %40
    %v42 = vsel %vm38, %v37, 0.0
    %43 = vadd.xlane.f32.xlu0 %v42
    %v44 = vpop.xlane.xlu0 %43
    %v45 = vrcp.pop 32.0
    %v46 = vmul.f32 32.0, %v45
    %v47 = vsub.f32 1.0, %v46
    %v48 = vmul.f32 %v45, %v47
    %v49 = vadd.f32 %v45, %v48
    %vm50 = vweird.f32 %v45
    %v51 = vsel %vm50, %v45, %v49
    %v52 = vmul.f32 %v41, %v51
    %v53 = vmul.f32 %v44, %v51
    %v54 = vadd.f32 %v52, 1e-05
    %v55 = vadd.f32 %v53, 1e-05
    %v56 = vrcp.pop %v54
    %v57 = vmul.f32 %v54, %v56
    %v58 = vsub.f32 1.0, %v57
    %v59 = vmul.f32 %v56, %v58
    %v60 = vadd.f32 %v56, %v59
    %vm61 = vweird.f32 %v54
    %vm62 = vweird.f32 %v56
    %vm63 = vmor %vm61, %vm62
    %v64 = vsel %vm63, %v56, %v60
    %v65 = vand.u32 2147483647, %v54
    %vm66 = vcmp.eq.f32.partialorder %v65, 8.507059e+37
    %v67 = vand.u32 %v54, 2147483648
    %v68 = vor.u32 1.1754944e-38, %v67
    %v69 = vsel %vm66, %v68, %v64
    %v70 = vmul.f32 2.6457512, %v69
    %v71 = vrcp.pop %v55
    %v72 = vmul.f32 %v55, %v71
    %v73 = vsub.f32 1.0, %v72
    %v74 = vmul.f32 %v71, %v73
    %v75 = vadd.f32 %v71, %v74
    %vm76 = vweird.f32 %v55
    %vm77 = vweird.f32 %v71
    %vm78 = vmor %vm76, %vm77
    %v79 = vsel %vm78, %v71, %v75
    %v80 = vand.u32 2147483647, %v55
    %vm81 = vcmp.eq.f32.partialorder %v80, 8.507059e+37
    %v82 = vand.u32 %v55, 2147483648
    %v83 = vor.u32 1.1754944e-38, %v82
    %v84 = vsel %vm81, %v83, %v79
    %v85 = vmul.f32 2.6457512, %v84
    %v86 = vmul.f32 %v34, %v70
    %v87 = vmul.f32 %v35, %v85
    %v88 = vround.ne.pseudo %v86
    %v89 = vround.ne.pseudo %v87
    %v90 = vmax.f32 %v88, -8.0
    %v91 = vmax.f32 %v89, -8.0
    %v92 = vmin.f32 %v90, 7.0
    %v93 = vmin.f32 %v91, 7.0
    %v94 = vpack.c.bf16 %v93, %v92
    %v95 = vld [vmem:[%s2] sm:$0xf]
    %v96 = vld [vmem:[%s2 + $0x4] sm:$0xf]
    %v97 = vld [vmem:[%s2 + $0x8] sm:$0xf]
    %v98 = vld [vmem:[%s2 + $0xc] sm:$0xf]
    %v103 = vunpack.c.l.b16 %v95
    %v104 = vunpack.c.l.b16 %v96
    %v105 = vunpack.c.l.b16 %v97
    %v106 = vunpack.c.l.b16 %v98
    %v107 = vpack.c.b16 %v104, %v103
    %v108 = vpack.c.b16 %v106, %v105
    %v112 = vsel %vm38, %v94, 0
    %114 = vmatpush.bf16.msra.mxu0 0
    %115 = vmatpush.bf16.msra.mxu0 0
    %116 = vmatpush.bf16.msra.mxu0 0
    %117 = vmatpush.bf16.msra.mxu0 0
    %118 = vmatpush.bf16.msra.mxu0 0
    %119 = vmatpush.bf16.msra.mxu0 0
    %120 = vmatpush.bf16.msra.mxu0 %v108
    %121 = vmatpush.bf16.msra.mxu0 %v107
    %122 = vmatmul.bf16.gmra.mxu0 %v112
    %v123 = vpop.f32.mrf.mxu0
    %v124 = vadd.f32 0.0, %v123
    %v125 = vpop.f32.mrf.mxu0
    %v126 = vadd.f32 0.0, %v125
    %127 = vdwg.mxu0
    %v128 = vmax.f32 %v124, 0.0
    %v129 = vmax.f32 %v126, 0.0
    %v130 = vmul.f32 %v128, %v128
    %v131 = vmul.f32 %v129, %v129
    %134 = vrot.lane.b32.xlu0 %v130, 64
    %v135 = vpop.permute.xlu0 %134
    %136 = vrot.lane.b32.xlu0 %v131, 64
    %v137 = vpop.permute.xlu0 %136
    %v140 = vmul.f32 %v124, %v135
    %v141 = vmul.f32 %v126, %v137
    %v142 = vand.u32 2147483647, %v140
    %v143 = vand.u32 2147483647, %v141
    %vm144 = vcmask 1048064
    %v145 = vsel %vm144, %v142, -inf
    %146 = vmax.xlane.f32.xlu0 %v145
    %v147 = vpop.xlane.xlu0 %146
    %v148 = vsel %vm144, %v143, -inf
    %149 = vmax.xlane.f32.xlu0 %v148
    %v150 = vpop.xlane.xlu0 %149
    %v151 = vmul.f32 %v52, %v52
    %v152 = vmul.f32 %v53, %v53
    %v153 = vmul.f32 %v151, %v52
    %v154 = vmul.f32 %v152, %v53
    %v155 = vstv %s32
    %v156 = vmul.f32 %v153, %v155
    %v157 = vmul.f32 %v154, %v155
    %v158 = vmul.f32 %v156, %v147
    %v159 = vmul.f32 %v157, %v150
    %v160 = vmul.f32 %v156, 127.0
    %v161 = vmul.f32 %v157, 127.0
    %v162 = vadd.f32 %v158, 1e-05
    %v163 = vadd.f32 %v159, 1e-05
    %v164 = vrcp.pop %v162
    %v165 = vmul.f32 %v162, %v164
    %v166 = vsub.f32 1.0, %v165
    %v167 = vmul.f32 %v164, %v166
    %v168 = vadd.f32 %v164, %v167
    %vm169 = vweird.f32 %v162
    %vm170 = vweird.f32 %v164
    %vm171 = vmor %vm169, %vm170
    %v172 = vsel %vm171, %v164, %v168
    %v173 = vand.u32 2147483647, %v162
    %vm174 = vcmp.eq.f32.partialorder %v173, 8.507059e+37
    %v175 = vand.u32 %v162, 2147483648
    %v176 = vor.u32 1.1754944e-38, %v175
    %v177 = vsel %vm174, %v176, %v172
    %v178 = vmul.f32 %v160, %v177
    %v179 = vrcp.pop %v163
    %v180 = vmul.f32 %v163, %v179
    %v181 = vsub.f32 1.0, %v180
    %v182 = vmul.f32 %v179, %v181
    %v183 = vadd.f32 %v179, %v182
    %vm184 = vweird.f32 %v163
    %vm185 = vweird.f32 %v179
    %vm186 = vmor %vm184, %vm185
    %v187 = vsel %vm186, %v179, %v183
    %v188 = vand.u32 2147483647, %v163
    %vm189 = vcmp.eq.f32.partialorder %v188, 8.507059e+37
    %v190 = vand.u32 %v163, 2147483648
    %v191 = vor.u32 1.1754944e-38, %v190
    %v192 = vsel %vm189, %v191, %v187
    %v193 = vmul.f32 %v161, %v192
    %v194 = vmul.f32 %v140, %v178
    %v195 = vmul.f32 %v141, %v193
    %v196 = vround.ne.pseudo %v194
    %v197 = vround.ne.pseudo %v195
    %v198 = vmax.f32 %v196, -128.0
    %v199 = vmax.f32 %v197, -128.0
    %v200 = vmin.f32 %v198, 127.0
    %v201 = vmin.f32 %v199, 127.0
    %v202 = vpack.c.bf16 %v201, %v200
    %v203 = vld [vmem:[%s3] sm:$0xf]
    %v204 = vld [vmem:[%s3 + $0x4] sm:$0xf]
    %v205 = vld [vmem:[%s3 + $0x8] sm:$0xf]
    %v206 = vld [vmem:[%s3 + $0xc] sm:$0xf]
    %v207 = vld [vmem:[%s3 + $0x10] sm:$0xf]
    %v208 = vld [vmem:[%s3 + $0x14] sm:$0xf]
    %v209 = vld [vmem:[%s3 + $0x18] sm:$0xf]
    %v210 = vld [vmem:[%s3 + $0x1c] sm:$0xf]
    %212 = vrot.lane.b32.xlu0 %v202, 64
    %v213 = vpop.permute.xlu0 %212
    %v222 = vunpack.c.l.b16 %v203
    %v223 = vunpack.c.l.b16 %v204
    %v224 = vunpack.c.l.b16 %v205
    %v225 = vunpack.c.l.b16 %v206
    %v226 = vunpack.c.l.b16 %v207
    %v227 = vunpack.c.l.b16 %v208
    %v228 = vunpack.c.l.b16 %v209
    %v229 = vunpack.c.l.b16 %v210
    %v230 = vpack.c.b16 %v223, %v222
    %v231 = vpack.c.b16 %v225, %v224
    %v232 = vpack.c.b16 %v227, %v226
    %v233 = vpack.c.b16 %v229, %v228
    %vm238 = vcmask 523264
    %v240 = vsel %vm238, %v213, 0
    %242 = vmatpush.bf16.msra.mxu0 0
    %243 = vmatpush.bf16.msra.mxu0 0
    %244 = vmatpush.bf16.msra.mxu0 0
    %245 = vmatpush.bf16.msra.mxu0 0
    %246 = vmatpush.bf16.msra.mxu0 %v233
    %247 = vmatpush.bf16.msra.mxu0 %v232
    %248 = vmatpush.bf16.msra.mxu0 %v231
    %249 = vmatpush.bf16.msra.mxu0 %v230
    %250 = vmatmul.bf16.gmra.mxu0 %v240
    %v251 = vpop.f32.mrf.mxu0
    %v252 = vadd.f32 0.0, %v251
    %v253 = vpop.f32.mrf.mxu0
    %v254 = vadd.f32 0.0, %v253
    %255 = vdwg.mxu0
    %v256 = vstv %s33
    %v257 = vmul.f32 %v158, %v256
    %v258 = vmul.f32 %v159, %v256
    %v259 = vmul.f32 %v252, %v257
    %v260 = vmul.f32 %v254, %v258
    %261 = vst.msk [vmem:[#allocation5] sm:$0xff] %vm38, %v259
    %262 = vst.msk [vmem:[#allocation5 + $0x8] sm:$0xff] %vm38, %v260
    // Predicated region
    $region22: #{tpu_custom_call.1} parent=1 // pred_check
      _
    $region23: #{tpu_custom_call.1} parent=1 // pred_check_branch
      %264 = sbr.rel (0) target = $region25
    $region24: #{tpu_custom_call.1} parent=1 // pred_region
      %266 = vsyncadd [#allocation3], 0
      %s267 = sshll.u32 [#allocation5], 4
      %s268 = int_to_ptr.vmem [resolvable:$true] %s267
      %s269 = sshll.u32 %s4, 4
      %s270 = int_to_ptr.hbm [resolvable:$true] %s269
      %275 = dma.vmem_to_hbm [thread:$0]  %s268, 256, %s270, [#allocation3], 128, 128, 8
    $region25: #{tpu_custom_call.1} parent=1 // pred_fallthru
      _
    // Predicated region
    $region26: #{tpu_custom_call.1} parent=1 // pred_check
      _
    $region27: #{tpu_custom_call.1} parent=1 // pred_check_branch
      %277 = sbr.rel (0) target = $region29
    $region28: #{tpu_custom_call.1} parent=1 // pred_region
      %279 = dma.done [#allocation3], 256
    $region29: #{tpu_custom_call.1} parent=1 // pred_fallthru
      _
    %280 = vsyncpa [#allocation3], 1
    %281 = vsyncpa [#allocation4], 1

</llo_original>
